<compile_context>
chip_gen: v6e
topology: v6e:2x2x1
jax: 0.10.0
libtpu: 0.0.40
codegen_flags: <defaults>
</compile_context>

<pallas_src>
import functools

import jax
import jax.numpy as jnp
from jax.experimental import pallas as pl
from jax.experimental.pallas import tpu as pltpu

SMOOTHING = 0.1

_NEG_LARGE = -1e30  # finite "-inf" for masked class lanes (exp underflows to 0)


def _round_up(x, m):
    return ((x + m - 1) // m) * m


def _cdiv(a, b):
    return -(-a // b)


def _ls_ce_kernel(logit_ref, target_ref, loss_ref,
                  m_scr, se_scr, ps_scr, tl_scr,
                  *, smoothing, confidence, c_total, tc, tail):
    """Streaming label-smoothing CE over class tiles.

    Scratch (per-row running state, shape (tn, 1) f32):
      m_scr  : running max over classes seen so far
      se_scr : running sum of exp(logit - m)
      ps_scr : running plain sum of logits (real classes only)
      tl_scr : logit at the target class
    `tail` is the number of valid lanes in the LAST class tile (static);
    when tail == tc every tile is full and no masking code is emitted.
    """
    j = pl.program_id(1)
    last = pl.num_programs(1) - 1
    tn = logit_ref.shape[0]

    @pl.when(j == 0)
    def _init():
        m_scr[...] = jnp.full_like(m_scr, -jnp.inf)
        se_scr[...] = jnp.zeros_like(se_scr)
        ps_scr[...] = jnp.zeros_like(ps_scr)
        tl_scr[...] = jnp.zeros_like(tl_scr)

    # Local lane ids [0, tc) -- no per-step full-tile "+ j*tc" add; instead the
    # target index is localized per row (a cheap (tn, 1) scalar-ish op).
    col_ids = jax.lax.broadcasted_iota(jnp.int32, (tn, tc), 1)
    tgt_local = target_ref[...] - j * tc                        # (tn, 1) int32

    def _update(blk_f32, sum_src):
        # Online log-sum-exp.
        blk_max = jnp.max(blk_f32, axis=-1, keepdims=True)
        m_new = jnp.maximum(m_scr[...], blk_max)
        alpha = jnp.exp(m_scr[...] - m_new)
        se_scr[...] = alpha * se_scr[...] + jnp.sum(
            jnp.exp(blk_f32 - m_new), axis=-1, keepdims=True)
        m_scr[...] = m_new
        # Plain sum over real classes (for the smoothing term).
        ps_scr[...] = ps_scr[...] + jnp.sum(sum_src, axis=-1, keepdims=True)
        # Gather logit[i, target[i]] via select (no f32 one-hot matmul).
        tl_scr[...] = tl_scr[...] + jnp.sum(
            jnp.where(col_ids == tgt_local, blk_f32, 0.0),
            axis=-1, keepdims=True)

    def _full_tile():
        blk = logit_ref[...]                                    # native dtype
        # max is exact in the native dtype; upcast fuses into exp/sums.
        blk_f32 = blk.astype(jnp.float32)
        _update(blk_f32, blk_f32)

    if tail == tc:
        # Every class tile is fully valid: no masking anywhere.
        _full_tile()
    else:
        @pl.when(j != last)
        def _hot():
            _full_tile()

        @pl.when(j == last)
        def _masked_tail():
            valid = col_ids < tail                              # static bound
            blk_f32 = jnp.where(valid, logit_ref[...].astype(jnp.float32),
                                _NEG_LARGE)
            _update(blk_f32, jnp.where(valid, blk_f32, 0.0))

    @pl.when(j == last)
    def _finalize():
        lse = m_scr[...] + jnp.log(se_scr[...])                 # (tn, 1)
        nll = lse - tl_scr[...]                                 # -logprob[target]
        smooth = lse - ps_scr[...] * (1.0 / c_total)            # -mean_c logprob
        loss_ref[...] = confidence * nll + smoothing * smooth


def label_smoothing_cross_entropy(logit, target, smoothing=SMOOTHING,
                                  *, block_rows=256, max_block_cols=4096):
    """logit: (N, C) float (f32 or bf16), target: (N,) int -> scalar f32 loss."""
    assert smoothing < 1.0
    assert block_rows % 16 == 0 and max_block_cols % 128 == 0
    n, c = logit.shape
    confidence = 1.0 - smoothing

    # ---- batch tiling (no padding) -----------------------------------------
    # Multiple of 16 (bf16 sublane packing). Prefer >= 2 batch tiles so both
    # v7x TensorCores engage. The last partial block reads past N; those rows'
    # outputs are dropped by the pipeline's clamped writeback and never enter
    # the mean.
    if n <= 16:
        tn = n                       # single full-dim block (always legal)
    else:
        tn = min(block_rows, _round_up(_cdiv(n, 2), 16))

    # ---- class tiling (no padding) -----------------------------------------
    # Full C in one block when it fits; otherwise 128-aligned streaming tiles
    # with the ragged tail masked in-kernel.
    tc = c if c <= max_block_cols else max_block_cols
    grid = (_cdiv(n, tn), _cdiv(c, tc))
    tail = c - (grid[1] - 1) * tc          # valid lanes in the last class tile

    target2d = target.astype(jnp.int32).reshape(n, 1)

    # VMEM budget: double-buffered input tile + f32 working set + headroom.
    # Capped at 48 MiB so we never starve v7x (64 MiB physical per core).
    in_itemsize = jnp.dtype(logit.dtype).itemsize
    est_vmem = 2 * tn * tc * in_itemsize + 4 * tn * tc * 4 + (1 << 20)
    vmem_limit = int(min(max(est_vmem, 8 << 20), 48 << 20))

    kernel = functools.partial(
        _ls_ce_kernel, smoothing=smoothing, confidence=confidence,
        c_total=c, tc=tc, tail=tail)

    cost = pl.CostEstimate(
        flops=8 * n * c,
        transcendentals=n * c,
        bytes_accessed=n * c * in_itemsize + 8 * n,
    )

    per_row = pl.pallas_call(
        kernel,
        out_shape=jax.ShapeDtypeStruct((n, 1), jnp.float32),
        grid_spec=pltpu.PrefetchScalarGridSpec(
            num_scalar_prefetch=0,
            grid=grid,
            in_specs=[
                # NOTE(v5e): sweep pipeline_mode=pl.Buffered(3) here if the
                # profile shows exposed DMA at batch-tile boundaries.
                pl.BlockSpec((tn, tc), lambda i, j: (i, j)),
                pl.BlockSpec((tn, 1), lambda i, j: (i, 0)),
            ],
            out_specs=pl.BlockSpec((tn, 1), lambda i, j: (i, 0)),
            scratch_shapes=[pltpu.VMEM((tn, 1), jnp.float32)] * 4,
        ),
        compiler_params=pltpu.CompilerParams(
            dimension_semantics=("parallel", "arbitrary"),
            vmem_limit_bytes=vmem_limit,
        ),
        cost_estimate=cost,
    )(logit, target2d)

    # Final mean over the true batch size (partial-block rows were clamped out).
    return jnp.mean(per_row)


def _reference(logit, target, smoothing=SMOOTHING):
    logprobs = jax.nn.log_softmax(logit.astype(jnp.float32), axis=-1)
    nll = -jnp.take_along_axis(logprobs, target[:, None], axis=-1)[:, 0]
    smooth = -jnp.mean(logprobs, axis=-1)
    return jnp.mean((1.0 - smoothing) * nll + smoothing * smooth)


if __name__ == "__main__":
    key = jax.random.PRNGKey(0)
    k1, k2, k3, k4, k5, k6 = jax.random.split(key, 6)

    # Case 1: single class tile (tc == C), ragged batch (partial last batch
    # block read past N, outputs clamped).
    n1, c1 = 24, 48
    logit1 = jax.random.normal(k1, (n1, c1), dtype=jnp.float32)
    target1 = jax.random.randint(k2, (n1,), 0, c1, dtype=jnp.int32)
    loss1 = jax.block_until_ready(label_smoothing_cross_entropy(logit1, target1))
    ref1 = _reference(logit1, target1)
    assert jnp.allclose(loss1, ref1, atol=1e-5, rtol=1e-5), (loss1, ref1)

    # Case 2: streaming class tiles with a ragged, in-kernel-masked class tail
    # (C=200 over 128-wide tiles) plus multiple ragged batch tiles.
    n2, c2 = 40, 200
    logit2 = jax.random.normal(k3, (n2, c2), dtype=jnp.float32)
    target2 = jax.random.randint(k4, (n2,), 0, c2, dtype=jnp.int32)
    loss2 = jax.block_until_ready(
        label_smoothing_cross_entropy(logit2, target2,
                                      block_rows=16, max_block_cols=128))
    ref2 = _reference(logit2, target2)
    assert jnp.allclose(loss2, ref2, atol=1e-5, rtol=1e-5), (loss2, ref2)

    # Case 3: bf16 logits, multiple full class tiles (no tail mask), 2 batch
    # tiles (megacore path).
    n3, c3 = 32, 384
    logit3 = jax.random.normal(k5, (n3, c3), dtype=jnp.float32).astype(jnp.bfloat16)
    target3 = jax.random.randint(k6, (n3,), 0, c3, dtype=jnp.int32)
    loss3 = jax.block_until_ready(
        label_smoothing_cross_entropy(logit3, target3, max_block_cols=128))
    ref3 = _reference(logit3, target3)
    assert jnp.allclose(loss3, ref3, atol=1e-4, rtol=1e-4), (loss3, ref3)

    print("KERNEL_OK")
</pallas_src>

<mosaic_0001>
module attributes {stable_mosaic.version = 11 : i64} {
  func.func @_ls_ce_kernel(%arg0: i32, %arg1: i32, %arg2: memref<16x48xf32, #tpu.memory_space<vmem>>, %arg3: memref<16x1xi32, #tpu.memory_space<vmem>>, %arg4: memref<16x1xf32, #tpu.memory_space<vmem>>, %arg5: memref<16x1xf32, #tpu.memory_space<vmem>>, %arg6: memref<16x1xf32, #tpu.memory_space<vmem>>, %arg7: memref<16x1xf32, #tpu.memory_space<vmem>>, %arg8: memref<16x1xf32, #tpu.memory_space<vmem>>) attributes {dimension_semantics = [#tpu.dimension_semantics<parallel>, #tpu.dimension_semantics<arbitrary>], iteration_bounds = array<i64: 2, 1>, scalar_prefetch = 0 : i64, scratch_operands = 4 : i64, tpu.core_type = #tpu.core_type<tc>, window_params = [{transform_indices = @transform_0, window_bounds = array<i64: 16, 48>}, {transform_indices = @transform_1, window_bounds = array<i64: 16, 1>}, {transform_indices = @transform_2, window_bounds = array<i64: 16, 1>}]} {
    %c0_i32 = arith.constant 0 : i32
    %0 = arith.cmpi eq, %arg1, %c0_i32 : i32
    %1 = arith.extui %0 : i1 to i32
    %c0_i32_0 = arith.constant 0 : i32
    %2 = arith.cmpi ne, %1, %c0_i32_0 : i32
    scf.if %2 {
      %cst_28 = arith.constant 0xFF800000 : f32
      %43 = vector.broadcast %cst_28 : f32 to vector<16x1xf32>
      %c0_29 = arith.constant 0 : index
      %c0_30 = arith.constant 0 : index
      %44 = vector.load %arg5[%c0_29, %c0_30] : memref<16x1xf32, #tpu.memory_space<vmem>>, vector<16x1xf32>
      tpu.vector_store %arg5[%c0_29, %c0_30], %43 {strides = array<i32>} : memref<16x1xf32, #tpu.memory_space<vmem>>, vector<16x1xf32>,
      %cst_31 = arith.constant 0.000000e+00 : f32
      %45 = vector.broadcast %cst_31 : f32 to vector<16x1xf32>
      %c0_32 = arith.constant 0 : index
      %c0_33 = arith.constant 0 : index
      %46 = vector.load %arg6[%c0_32, %c0_33] : memref<16x1xf32, #tpu.memory_space<vmem>>, vector<16x1xf32>
      tpu.vector_store %arg6[%c0_32, %c0_33], %45 {strides = array<i32>} : memref<16x1xf32, #tpu.memory_space<vmem>>, vector<16x1xf32>,
      %cst_34 = arith.constant 0.000000e+00 : f32
      %47 = vector.broadcast %cst_34 : f32 to vector<16x1xf32>
      %c0_35 = arith.constant 0 : index
      %c0_36 = arith.constant 0 : index
      %48 = vector.load %arg7[%c0_35, %c0_36] : memref<16x1xf32, #tpu.memory_space<vmem>>, vector<16x1xf32>
      tpu.vector_store %arg7[%c0_35, %c0_36], %47 {strides = array<i32>} : memref<16x1xf32, #tpu.memory_space<vmem>>, vector<16x1xf32>,
      %cst_37 = arith.constant 0.000000e+00 : f32
      %49 = vector.broadcast %cst_37 : f32 to vector<16x1xf32>
      %c0_38 = arith.constant 0 : index
      %c0_39 = arith.constant 0 : index
      %50 = vector.load %arg8[%c0_38, %c0_39] : memref<16x1xf32, #tpu.memory_space<vmem>>, vector<16x1xf32>
      tpu.vector_store %arg8[%c0_38, %c0_39], %49 {strides = array<i32>} : memref<16x1xf32, #tpu.memory_space<vmem>>, vector<16x1xf32>,
    } else {
    }
    %3 = tpu.iota {dimensions = array<i32: 1>} : vector<16x48xi32>
    %c0 = arith.constant 0 : index
    %c0_1 = arith.constant 0 : index
    %4 = vector.load %arg3[%c0, %c0_1] : memref<16x1xi32, #tpu.memory_space<vmem>>, vector<16x1xi32>
    %c48_i32 = arith.constant 48 : i32
    %5 = arith.muli %arg1, %c48_i32 : i32
    %6 = vector.broadcast %5 : i32 to vector<16x1xi32>
    %7 = arith.subi %4, %6 : vector<16x1xi32>
    %c0_2 = arith.constant 0 : index
    %c0_3 = arith.constant 0 : index
    %8 = vector.load %arg2[%c0_2, %c0_3] : memref<16x48xf32, #tpu.memory_space<vmem>>, vector<16x48xf32>
    %cst = arith.constant dense<0xFF800000> : vector<16xf32>
    %9 = vector.multi_reduction <maximumf>, %8, %cst [1] : vector<16x48xf32> to vector<16xf32>
    %10 = vector.shape_cast %9 : vector<16xf32> to vector<16x1xf32>
    %c0_4 = arith.constant 0 : index
    %c0_5 = arith.constant 0 : index
    %11 = vector.load %arg5[%c0_4, %c0_5] : memref<16x1xf32, #tpu.memory_space<vmem>>, vector<16x1xf32>
    %12 = arith.maximumf %11, %10 : vector<16x1xf32>
    %c0_6 = arith.constant 0 : index
    %c0_7 = arith.constant 0 : index
    %13 = vector.load %arg5[%c0_6, %c0_7] : memref<16x1xf32, #tpu.memory_space<vmem>>, vector<16x1xf32>
    %14 = arith.subf %13, %12 : vector<16x1xf32>
    %15 = math.exp %14 : vector<16x1xf32>
    %c0_8 = arith.constant 0 : index
    %c0_9 = arith.constant 0 : index
    %16 = vector.load %arg6[%c0_8, %c0_9] : memref<16x1xf32, #tpu.memory_space<vmem>>, vector<16x1xf32>
    %17 = arith.mulf %15, %16 : vector<16x1xf32>
    %18 = vector.broadcast %12 : vector<16x1xf32> to vector<16x48xf32>
    %19 = arith.subf %8, %18 : vector<16x48xf32>
    %20 = math.exp %19 : vector<16x48xf32>
    %cst_10 = arith.constant dense<0.000000e+00> : vector<16xf32>
    %21 = vector.multi_reduction <add>, %20, %cst_10 [1] : vector<16x48xf32> to vector<16xf32>
    %22 = vector.shape_cast %21 : vector<16xf32> to vector<16x1xf32>
    %23 = arith.addf %17, %22 : vector<16x1xf32>
    %c0_11 = arith.constant 0 : index
    %c0_12 = arith.constant 0 : index
    %24 = vector.load %arg6[%c0_11, %c0_12] : memref<16x1xf32, #tpu.memory_space<vmem>>, vector<16x1xf32>
    tpu.vector_store %arg6[%c0_11, %c0_12], %23 {strides = array<i32>} : memref<16x1xf32, #tpu.memory_space<vmem>>, vector<16x1xf32>,
    %c0_13 = arith.constant 0 : index
    %c0_14 = arith.constant 0 : index
    %25 = vector.load %arg5[%c0_13, %c0_14] : memref<16x1xf32, #tpu.memory_space<vmem>>, vector<16x1xf32>
    tpu.vector_store %arg5[%c0_13, %c0_14], %12 {strides = array<i32>} : memref<16x1xf32, #tpu.memory_space<vmem>>, vector<16x1xf32>,
    %c0_15 = arith.constant 0 : index
    %c0_16 = arith.constant 0 : index
    %26 = vector.load %arg7[%c0_15, %c0_16] : memref<16x1xf32, #tpu.memory_space<vmem>>, vector<16x1xf32>
    %cst_17 = arith.constant dense<0.000000e+00> : vector<16xf32>
    %27 = vector.multi_reduction <add>, %8, %cst_17 [1] : vector<16x48xf32> to vector<16xf32>
    %28 = vector.shape_cast %27 : vector<16xf32> to vector<16x1xf32>
    %29 = arith.addf %26, %28 : vector<16x1xf32>
    %c0_18 = arith.constant 0 : index
    %c0_19 = arith.constant 0 : index
    %30 = vector.load %arg7[%c0_18, %c0_19] : memref<16x1xf32, #tpu.memory_space<vmem>>, vector<16x1xf32>
    tpu.vector_store %arg7[%c0_18, %c0_19], %29 {strides = array<i32>} : memref<16x1xf32, #tpu.memory_space<vmem>>, vector<16x1xf32>,
    %c0_20 = arith.constant 0 : index
    %c0_21 = arith.constant 0 : index
    %31 = vector.load %arg8[%c0_20, %c0_21] : memref<16x1xf32, #tpu.memory_space<vmem>>, vector<16x1xf32>
    %32 = vector.broadcast %7 : vector<16x1xi32> to vector<16x48xi32>
    %33 = arith.cmpi eq, %3, %32 : vector<16x48xi32>
    %cst_22 = arith.constant 0.000000e+00 : f32
    %34 = vector.broadcast %cst_22 : f32 to vector<16x48xf32>
    %35 = arith.select %33, %8, %34 : vector<16x48xi1>, vector<16x48xf32>
    %cst_23 = arith.constant dense<0.000000e+00> : vector<16xf32>
    %36 = vector.multi_reduction <add>, %35, %cst_23 [1] : vector<16x48xf32> to vector<16xf32>
    %37 = vector.shape_cast %36 : vector<16xf32> to vector<16x1xf32>
    %38 = arith.addf %31, %37 : vector<16x1xf32>
    %c0_24 = arith.constant 0 : index
    %c0_25 = arith.constant 0 : index
    %39 = vector.load %arg8[%c0_24, %c0_25] : memref<16x1xf32, #tpu.memory_space<vmem>>, vector<16x1xf32>
    tpu.vector_store %arg8[%c0_24, %c0_25], %38 {strides = array<i32>} : memref<16x1xf32, #tpu.memory_space<vmem>>, vector<16x1xf32>,
    %c0_i32_26 = arith.constant 0 : i32
    %40 = arith.cmpi eq, %arg1, %c0_i32_26 : i32
    %41 = arith.extui %40 : i1 to i32
    %c0_i32_27 = arith.constant 0 : i32
    %42 = arith.cmpi ne, %41, %c0_i32_27 : i32
    scf.if %42 {
      %c0_28 = arith.constant 0 : index
      %c0_29 = arith.constant 0 : index
      %43 = vector.load %arg5[%c0_28, %c0_29] : memref<16x1xf32, #tpu.memory_space<vmem>>, vector<16x1xf32>
      %c0_30 = arith.constant 0 : index
      %c0_31 = arith.constant 0 : index
      %44 = vector.load %arg6[%c0_30, %c0_31] : memref<16x1xf32, #tpu.memory_space<vmem>>, vector<16x1xf32>
      %45 = math.log %44 : vector<16x1xf32>
      %46 = arith.addf %43, %45 : vector<16x1xf32>
      %c0_32 = arith.constant 0 : index
      %c0_33 = arith.constant 0 : index
      %47 = vector.load %arg8[%c0_32, %c0_33] : memref<16x1xf32, #tpu.memory_space<vmem>>, vector<16x1xf32>
      %48 = arith.subf %46, %47 : vector<16x1xf32>
      %c0_34 = arith.constant 0 : index
      %c0_35 = arith.constant 0 : index
      %49 = vector.load %arg7[%c0_34, %c0_35] : memref<16x1xf32, #tpu.memory_space<vmem>>, vector<16x1xf32>
      %cst_36 = arith.constant 0.020833334 : f32
      %50 = vector.broadcast %cst_36 : f32 to vector<16x1xf32>
      %51 = arith.mulf %49, %50 : vector<16x1xf32>
      %52 = arith.subf %46, %51 : vector<16x1xf32>
      %cst_37 = arith.constant 0.899999976 : f32
      %53 = vector.broadcast %cst_37 : f32 to vector<16x1xf32>
      %54 = arith.mulf %53, %48 : vector<16x1xf32>
      %cst_38 = arith.constant 1.000000e-01 : f32
      %55 = vector.broadcast %cst_38 : f32 to vector<16x1xf32>
      %56 = arith.mulf %55, %52 : vector<16x1xf32>
      %57 = arith.addf %54, %56 : vector<16x1xf32>
      %c0_39 = arith.constant 0 : index
      %c0_40 = arith.constant 0 : index
      %58 = vector.load %arg4[%c0_39, %c0_40] : memref<16x1xf32, #tpu.memory_space<vmem>>, vector<16x1xf32>
      tpu.vector_store %arg4[%c0_39, %c0_40], %57 {strides = array<i32>} : memref<16x1xf32, #tpu.memory_space<vmem>>, vector<16x1xf32>,
    } else {
    }
    return
  }
  func.func @transform_0(%arg0: i32, %arg1: i32) -> (i32, i32) {
    %c0_i32 = arith.constant 0 : i32
    return %arg0, %arg1 : i32, i32
  }
  func.func @transform_1(%arg0: i32, %arg1: i32) -> (i32, i32) {
    %c0_i32 = arith.constant 0 : i32
    %c0_i32_0 = arith.constant 0 : i32
    return %arg0, %c0_i32 : i32, i32
  }
  func.func @transform_2(%arg0: i32, %arg1: i32) -> (i32, i32) {
    %c0_i32 = arith.constant 0 : i32
    %c0_i32_0 = arith.constant 0 : i32
    return %arg0, %c0_i32 : i32, i32
  }
}

</mosaic_0001>

<llo_original>
// kernel: tpu_custom_call.1
$region0: #{tpu_custom_call.1}
  #allocation0 [shape = 'u32[]', space=smem, size = 0x4, offset = 0x4, fixed_abs, tag = 'smem constant byte address 0x4 - core index']
  #allocation1 [shape = 'u32[144,128]{1,0:T(1,128)}', space=vmem, size = 0x12000, scoped, tag = 'internal scratch']
  #allocation2 [shape = 'f32[16,1]{1,0:T(8,128)}', space=vmem, size = 0x2000, scoped, tag = 'scratch operand']
  #allocation3 [shape = 'f32[16,1]{1,0:T(8,128)}', space=vmem, size = 0x2000, scoped, tag = 'scratch operand']
  #allocation4 [shape = 'f32[16,1]{1,0:T(8,128)}', space=vmem, size = 0x2000, scoped, tag = 'scratch operand']
  #allocation5 [shape = 'f32[16,1]{1,0:T(8,128)}', space=vmem, size = 0x2000, scoped, tag = 'scratch operand']
  %s0 = inlined_call_operand.vmem [shape: f32[24,48], index: 0, kind: input, shape index: {}]
  %s1 = inlined_call_operand.vmem [shape: s32[24,1], index: 1, kind: input, shape index: {}]
  %s2 = inlined_call_operand.vmem [shape: f32[24,1], index: 2, kind: output, shape index: {}]
  %s3 = sld [smem:[#allocation0]]
  $region97: #{tpu_custom_call.1} parent=0
    _
  %s5 = ssub.s32 1, %s3
  %s6 = scalar_select 0, %s5, %s3
  $region1: #{tpu_custom_call.1} parent=0
    #allocation6 [shape = 'u8[16384]{0}', space=vmem, size = 0x4000, scoped, tag = 'output window, operand 0']
    loop: start=0, step=1, limit=4
    $region2: #{tpu_custom_call.1} parent=1 // loop_pre_header
      _
    $region3: #{tpu_custom_call.1} parent=1 // loop_header
      %s8 = sphi 0, %s12
      %p9 = scmp.ge.s32.totalorder %s8, 4
      %s15 = sphi 0, %s27
      %s16 = sphi 0, %s23
      %s17 = sphi 0, %s15
      %s18 = sphi 0, %s16
      %s19 = sphi 0, %s17
      %s20 = sphi 0, %s18
      %s32 = sphi 0, %s34
      %s35 = sphi 0, %s32
      %s36 = sphi 0, %s35
      %s52 = sphi 0, %s36
      %s58 = sphi 0, %s60
      %s61 = sphi 0, %s58
      %s62 = sphi 0, %s61
      %s78 = sphi 0, %s62
      %s84 = sphi 0, %s86
      %s87 = sphi 0, %s84
      %s88 = sphi 0, %s87
      %s104 = sphi 0, %s88
    $region4: #{tpu_custom_call.1} parent=1 // loop_header_branch
      %11 = sbr.rel (%p9) target = $region8
    $region5: #{tpu_custom_call.1} parent=1 // loop_body
      %s13 = ssub.s32 %s8, 1
      %s14 = ssub.s32 %s8, 2
      %s21 = sadd.s32 1, %s16
      %p22 = scmp.ge.s32.totalorder %s21, 1
      %s23 = scalar_select %p22, 0, %s21
      %s24 = sadd.s32 1, %s15
      %s25 = scalar_select %p22, %s24, %s15
      %p26 = scmp.ge.s32.totalorder %s25, 2
      %s27 = scalar_select %p26, 0, %s25
      %s28 = ssub.s32 %s15, %s27
      %s29 = ssub.s32 %s16, %s23
      %s30 = sor.u32 %s28, %s29
      %p31 = scmp.eq.s32.totalorder %s30, 0
      %s33 = sadd.s32 %s32, 1
      %s34 = scalar_select %p31, %s32, %s33
      %p37 = pneg %p31
      %p38 = scmp.eq.s32.totalorder %s8, 1
      %p39 = por %p37, %p38
      %p40 = scmp.ne.s32.totalorder %s32, %s35
      %p41 = scmp.eq.s32.totalorder %s8, 0
      %p42 = por %p40, %p41
      %p43 = scmp.ne.s32.totalorder %s32, %s35
      %p44 = scmp.eq.s32.totalorder %s13, 1
      %p45 = por %p43, %p44
      %p46 = scmp.ne.s32.totalorder %s35, %s36
      %p47 = scmp.eq.s32.totalorder %s13, 0
      %p48 = por %p46, %p47
      %p49 = scmp.ne.s32.totalorder %s35, %s36
      %p50 = scmp.eq.s32.totalorder %s14, 1
      %p51 = por %p49, %p50
      %p53 = scmp.ne.s32.totalorder %s36, %s52
      %p54 = scmp.eq.s32.totalorder %s14, 0
      %p55 = por %p53, %p54
      %s56 = ssub.s32 %s15, %s27
      %p57 = scmp.eq.s32.totalorder %s56, 0
      %s59 = sadd.s32 %s58, 1
      %s60 = scalar_select %p57, %s58, %s59
      %p63 = pneg %p57
      %p64 = scmp.eq.s32.totalorder %s8, 1
      %p65 = por %p63, %p64
      %p66 = scmp.ne.s32.totalorder %s58, %s61
      %p67 = scmp.eq.s32.totalorder %s8, 0
      %p68 = por %p66, %p67
      %p69 = scmp.ne.s32.totalorder %s58, %s61
      %p70 = scmp.eq.s32.totalorder %s13, 1
      %p71 = por %p69, %p70
      %p72 = scmp.ne.s32.totalorder %s61, %s62
      %p73 = scmp.eq.s32.totalorder %s13, 0
      %p74 = por %p72, %p73
      %p75 = scmp.ne.s32.totalorder %s61, %s62
      %p76 = scmp.eq.s32.totalorder %s14, 1
      %p77 = por %p75, %p76
      %p79 = scmp.ne.s32.totalorder %s62, %s78
      %p80 = scmp.eq.s32.totalorder %s14, 0
      %p81 = por %p79, %p80
      %s82 = ssub.s32 %s15, %s27
      %p83 = scmp.eq.s32.totalorder %s82, 0
      %s85 = sadd.s32 %s84, 1
      %s86 = scalar_select %p83, %s84, %s85
      %p89 = pneg %p83
      %p90 = scmp.eq.s32.totalorder %s8, 1
      %p91 = por %p89, %p90
      %p92 = scmp.ne.s32.totalorder %s84, %s87
      %p93 = scmp.eq.s32.totalorder %s8, 0
      %p94 = por %p92, %p93
      %p95 = scmp.ne.s32.totalorder %s84, %s87
      %p96 = scmp.eq.s32.totalorder %s13, 1
      %p97 = por %p95, %p96
      %p98 = scmp.ne.s32.totalorder %s87, %s88
      %p99 = scmp.eq.s32.totalorder %s13, 0
      %p100 = por %p98, %p99
      %p101 = scmp.ne.s32.totalorder %s87, %s88
      %p102 = scmp.eq.s32.totalorder %s14, 1
      %p103 = por %p101, %p102
      %p105 = scmp.ne.s32.totalorder %s88, %s104
      %p106 = scmp.eq.s32.totalorder %s14, 0
      %p107 = por %p105, %p106
      %p108 = scmp.le.s32.totalorder 1, %s8
      %p109 = scmp.lt.s32.totalorder %s8, 3
      %p110 = pnand %p108, %p109
      %p111 = pneg %p110
      // Predicated region
      $region9: #{tpu_custom_call.1} parent=5 // pred_check
        _
      $region10: #{tpu_custom_call.1} parent=5 // pred_check_branch
        %113 = sbr.rel (%p110) target = $region12
      $region11: #{tpu_custom_call.1} parent=5 // pred_region
        %s114 = ssub.s32 %s8, 1
      $region12: #{tpu_custom_call.1} parent=5 // pred_fallthru
        _
      %p115 = scmp.lt.s32.totalorder %s8, 2
      // Predicated region
      $region13: #{tpu_custom_call.1} parent=5 // pred_check
        %p116 = pneg %p115
      $region14: #{tpu_custom_call.1} parent=5 // pred_check_branch
        %118 = sbr.rel (%p116) target = $region16
      $region15: #{tpu_custom_call.1} parent=5 // pred_region
        // Predicated region
        $region17: #{tpu_custom_call.1} parent=15 // pred_check
          %p119 = pneg %p42
        $region18: #{tpu_custom_call.1} parent=15 // pred_check_branch
          %121 = sbr.rel (%p119) target = $region20
        $region19: #{tpu_custom_call.1} parent=15 // pred_region
          %s122 = smul.u32 2, %s15
          %s123 = ssub.s32 3, %s122
          %p124 = scmp.lt.s32.totalorder %s123, 2
          %s125 = scalar_select %p124, %s123, 2
          %s126 = smul.u32 128, %s125
          %p127 = scmp.lt.s32.totalorder %s122, 2
          %s128 = scalar_select %p127, %s122, 2
          %p129 = scmp.lt.s32.totalorder %s16, 0
          %s130 = scalar_select %p129, %s16, 0
          %s131 = sadd.s32 %s130, %s128
          %s132 = smul.addr %s131, 8
          %s133 = scalar_lea.vmem %s0, %s132
          %s134 = smul.u32 2, %s15
          %s135 = ssub.s32 3, %s134
          %p136 = scmp.lt.s32.totalorder %s135, 2
          %s137 = scalar_select %p136, %s135, 2
          %s138 = smul.u32 128, %s137
        $region20: #{tpu_custom_call.1} parent=15 // pred_fallthru
          _
        // Predicated region
        $region21: #{tpu_custom_call.1} parent=15 // pred_check
          %p139 = pneg %p68
        $region22: #{tpu_custom_call.1} parent=15 // pred_check_branch
          %141 = sbr.rel (%p139) target = $region24
        $region23: #{tpu_custom_call.1} parent=15 // pred_region
          %s142 = smul.u32 2, %s15
          %s143 = ssub.s32 3, %s142
          %p144 = scmp.lt.s32.totalorder %s143, 2
          %s145 = scalar_select %p144, %s143, 2
          %s146 = smul.u32 128, %s145
          %p147 = scmp.lt.s32.totalorder %s142, 2
          %s148 = scalar_select %p147, %s142, 2
          %s149 = smul.addr %s148, 8
          %s150 = scalar_lea.vmem %s1, %s149
          %s151 = smul.u32 2, %s15
          %s152 = ssub.s32 3, %s151
          %p153 = scmp.lt.s32.totalorder %s152, 2
          %s154 = scalar_select %p153, %s152, 2
          %s155 = smul.u32 128, %s154
        $region24: #{tpu_custom_call.1} parent=15 // pred_fallthru
          _
      $region16: #{tpu_custom_call.1} parent=5 // pred_fallthru
        _
      %p156 = scmp.le.s32.totalorder 1, %s8
      %p157 = scmp.lt.s32.totalorder %s8, 3
      %p158 = pnand %p156, %p157
      %p159 = pneg %p158
      // Predicated region
      $region25: #{tpu_custom_call.1} parent=5 // pred_check
        _
      $region26: #{tpu_custom_call.1} parent=5 // pred_check_branch
        %161 = sbr.rel (%p158) target = $region28
      $region27: #{tpu_custom_call.1} parent=5 // pred_region
        %s162 = ssub.s32 %s8, 1
        %s163 = smul.u32 2, %s17
        %s164 = ssub.s32 3, %s163
        %p165 = scmp.lt.s32.totalorder %s164, 2
        %s166 = scalar_select %p165, %s164, 2
        %s167 = smul.u32 128, %s166
        %p168 = scmp.lt.s32.totalorder %s163, 2
        %s169 = scalar_select %p168, %s163, 2
        %p170 = scmp.lt.s32.totalorder %s18, 0
        %s171 = scalar_select %p170, %s18, 0
        %s172 = sadd.s32 %s171, %s169
        %s173 = smul.addr %s172, 8
        %s174 = scalar_lea.vmem %s0, %s173
        %p175 = pneg %p48
        %p176 = pneg %p45
        %s177 = smul.u32 2, %s17
        %s178 = ssub.s32 3, %s177
        %p179 = scmp.lt.s32.totalorder %s178, 2
        %s180 = scalar_select %p179, %s178, 2
        %s181 = smul.u32 128, %s180
        %p182 = scmp.lt.s32.totalorder %s177, 2
        %s183 = scalar_select %p182, %s177, 2
        %s184 = smul.addr %s183, 8
        %s185 = scalar_lea.vmem %s1, %s184
        %p186 = pneg %p74
        %p187 = pneg %p71
        %p188 = pneg %p100
        %p189 = pneg %p97
        %s190 = sand.u32 %s87, 1
        %s191 = sand.u32 %s87, 1
        %s192 = smul.addr %s191, 16
        %s193 = scalar_lea.vmem [#allocation6], %s192
        %s194 = smul.u32 2, %s17
        %s195 = ssub.s32 3, %s194
        %p196 = scmp.lt.s32.totalorder %s195, 2
        %s197 = scalar_select %p196, %s195, 2
        %s198 = smul.u32 128, %s197
        %p199 = scmp.lt.s32.totalorder %s194, 2
        %s200 = scalar_select %p199, %s194, 2
        %p201 = scmp.lt.s32.totalorder %s18, 0
        %s202 = scalar_select %p201, %s18, 0
        %s203 = sadd.s32 %s202, %s200
        %s204 = smul.addr %s203, 8
        %s205 = scalar_lea.vmem %s0, %s204
        %s206 = smul.u32 2, %s17
        %s207 = ssub.s32 3, %s206
        %p208 = scmp.lt.s32.totalorder %s207, 2
        %s209 = scalar_select %p208, %s207, 2
        %s210 = smul.u32 128, %s209
        %s211 = smul.u32 2, %s17
        %s212 = ssub.s32 3, %s211
        %p213 = scmp.lt.s32.totalorder %s212, 2
        %s214 = scalar_select %p213, %s212, 2
        %s215 = smul.u32 128, %s214
        %p216 = scmp.lt.s32.totalorder %s211, 2
        %s217 = scalar_select %p216, %s211, 2
        %s218 = smul.addr %s217, 8
        %s219 = scalar_lea.vmem %s1, %s218
        %s220 = smul.u32 2, %s17
        %s221 = ssub.s32 3, %s220
        %p222 = scmp.lt.s32.totalorder %s221, 2
        %s223 = scalar_select %p222, %s221, 2
        %s224 = smul.u32 128, %s223
        %s225 = smul.u32 2, %s17
        %s226 = ssub.s32 3, %s225
        %p227 = scmp.lt.s32.totalorder %s226, 2
        %s228 = scalar_select %p227, %s226, 2
        %s229 = smul.u32 128, %s228
        %p230 = scmp.eq.s32.totalorder %s18, 0
        // Predicated region
        $region29: #{tpu_custom_call.1} parent=27 // pred_check
          %p231 = pneg %p230
        $region30: #{tpu_custom_call.1} parent=27 // pred_check_branch
          %233 = sbr.rel (%p231) target = $region32
        $region31: #{tpu_custom_call.1} parent=27 // pred_region
          %vm234 = vcmask 7168
          %235 = vst.msk [vmem:[#allocation2] sm:$0xff] %vm234, -inf
          %236 = vst.msk [vmem:[#allocation2 + $0x8] sm:$0xff] %vm234, -inf
          %237 = vst.msk [vmem:[#allocation3] sm:$0xff] %vm234, 0.0
          %238 = vst.msk [vmem:[#allocation3 + $0x8] sm:$0xff] %vm234, 0.0
          %239 = vst.msk [vmem:[#allocation4] sm:$0xff] %vm234, 0.0
          %240 = vst.msk [vmem:[#allocation4 + $0x8] sm:$0xff] %vm234, 0.0
          %241 = vst.msk [vmem:[#allocation5] sm:$0xff] %vm234, 0.0
          %242 = vst.msk [vmem:[#allocation5 + $0x8] sm:$0xff] %vm234, 0.0
        $region32: #{tpu_custom_call.1} parent=27 // pred_fallthru
          _
        %v243 = vlaneseq
        %v244 = vand.u32 %v243, 127
        %v245 = vld [vmem:[%s219] sm:$0xff]
        %v246 = vld [vmem:[%s219 + $0x8] sm:$0xff]
        %s247 = smul.u32 %s18, 48
        %v248 = vstv %s247
        %v249 = vsub.s32 %v245, %v248
        %v250 = vsub.s32 %v246, %v248
        %v251 = vld [vmem:[%s205] sm:$0xff]
        %v252 = vld [vmem:[%s205 + $0x8] sm:$0xff]
        %vm253 = vcmask 392192
        %v254 = vsel %vm253, %v251, -inf
        %255 = vmax.xlane.f32.xlu0 %v254
        %v256 = vpop.xlane.xlu0 %255
        %v257 = vsel %vm253, %v252, -inf
        %258 = vmax.xlane.f32.xlu0 %v257
        %v259 = vpop.xlane.xlu0 %258
        %v260 = vld [vmem:[#allocation2] sm:$0xff]
        %v261 = vld [vmem:[#allocation2 + $0x8] sm:$0xff]
        %v262 = vmax.f32 %v260, %v256
        %v263 = vmax.f32 %v261, %v259
        %v264 = vsub.f32 %v260, %v262
        %v265 = vsub.f32 %v261, %v263
        %v266 = vmul.f32 %v264, 1.442695
        %v267 = vpow.pop %v266
        %v268 = vmul.f32 %v265, 1.442695
        %v269 = vpow.pop %v268
        %v270 = vld [vmem:[#allocation3] sm:$0xff]
        %v271 = vld [vmem:[#allocation3 + $0x8] sm:$0xff]
        %v272 = vmul.f32 %v267, %v270
        %v273 = vmul.f32 %v269, %v271
        %275 = vset.pattern.permute.xlu0 0
        %276 = vperm.xlu0 %275, %v262
        %v277 = vpop.permute.xlu0 %276
        %280 = vset.pattern.permute.xlu0 0
        %281 = vperm.xlu0 %280, %v263
        %v282 = vpop.permute.xlu0 %281
        %v284 = vsub.f32 %v251, %v277
        %v285 = vsub.f32 %v252, %v282
        %v286 = vmul.f32 %v284, 1.442695
        %v287 = vpow.pop %v286
        %v288 = vmul.f32 %v285, 1.442695
        %v289 = vpow.pop %v288
        %v290 = vsel %vm253, %v287, 0.0
        %291 = vadd.xlane.f32.xlu0 %v290
        %v292 = vpop.xlane.xlu0 %291
        %v293 = vsel %vm253, %v289, 0.0
        %294 = vadd.xlane.f32.xlu0 %v293
        %v295 = vpop.xlane.xlu0 %294
        %v296 = vadd.f32 %v272, %v292
        %v297 = vadd.f32 %v273, %v295
        %vm298 = vcmask 7168
        %299 = vst.msk [vmem:[#allocation3] sm:$0xff] %vm298, %v296
        %300 = vst.msk [vmem:[#allocation3 + $0x8] sm:$0xff] %vm298, %v297
        %301 = vst.msk [vmem:[#allocation2] sm:$0xff] %vm298, %v262
        %302 = vst.msk [vmem:[#allocation2 + $0x8] sm:$0xff] %vm298, %v263
        %v303 = vld [vmem:[#allocation4] sm:$0xff]
        %v304 = vld [vmem:[#allocation4 + $0x8] sm:$0xff]
        %v305 = vsel %vm253, %v251, 0.0
        %306 = vadd.xlane.f32.xlu0 %v305
        %v307 = vpop.xlane.xlu0 %306
        %v308 = vsel %vm253, %v252, 0.0
        %309 = vadd.xlane.f32.xlu0 %v308
        %v310 = vpop.xlane.xlu0 %309
        %v311 = vadd.f32 %v303, %v307
        %v312 = vadd.f32 %v304, %v310
        %313 = vst.msk [vmem:[#allocation4] sm:$0xff] %vm298, %v311
        %314 = vst.msk [vmem:[#allocation4 + $0x8] sm:$0xff] %vm298, %v312
        %v315 = vld [vmem:[#allocation5] sm:$0xff]
        %v316 = vld [vmem:[#allocation5 + $0x8] sm:$0xff]
        %317 = vset.pattern.permute.xlu0 0
        %318 = vperm.xlu0 %317, %v249
        %v319 = vpop.permute.xlu0 %318
        %320 = vset.pattern.permute.xlu0 0
        %321 = vperm.xlu0 %320, %v250
        %v322 = vpop.permute.xlu0 %321
        %vm323 = vcmp.eq.s32.totalorder %v244, %v319
        %vm324 = vcmp.eq.s32.totalorder %v244, %v322
        %v325 = vsel %vm323, %v251, 0.0
        %v326 = vsel %vm324, %v252, 0.0
        %v327 = vsel %vm253, %v325, 0.0
        %328 = vadd.xlane.f32.xlu0 %v327
        %v329 = vpop.xlane.xlu0 %328
        %v330 = vsel %vm253, %v326, 0.0
        %331 = vadd.xlane.f32.xlu0 %v330
        %v332 = vpop.xlane.xlu0 %331
        %v333 = vadd.f32 %v315, %v329
        %v334 = vadd.f32 %v316, %v332
        %335 = vst.msk [vmem:[#allocation5] sm:$0xff] %vm298, %v333
        %336 = vst.msk [vmem:[#allocation5 + $0x8] sm:$0xff] %vm298, %v334
        // Predicated region
        $region33: #{tpu_custom_call.1} parent=27 // pred_check
          %p337 = pneg %p230
        $region34: #{tpu_custom_call.1} parent=27 // pred_check_branch
          %339 = sbr.rel (%p337) target = $region36
        $region35: #{tpu_custom_call.1} parent=27 // pred_region
          %v340 = vld [vmem:[#allocation2] sm:$0xff]
          %v341 = vld [vmem:[#allocation2 + $0x8] sm:$0xff]
          %v342 = vld [vmem:[#allocation3] sm:$0xff]
          %v343 = vld [vmem:[#allocation3 + $0x8] sm:$0xff]
          %v344 = vlog2.pop %v342
          %v345 = vmul.f32 %v344, 0.6931472
          %v346 = vlog2.pop %v343
          %v347 = vmul.f32 %v346, 0.6931472
          %v348 = vadd.f32 %v340, %v345
          %v349 = vadd.f32 %v341, %v347
          %v350 = vld [vmem:[#allocation5] sm:$0xff]
          %v351 = vld [vmem:[#allocation5 + $0x8] sm:$0xff]
          %v352 = vsub.f32 %v348, %v350
          %v353 = vsub.f32 %v349, %v351
          %v354 = vld [vmem:[#allocation4] sm:$0xff]
          %v355 = vld [vmem:[#allocation4 + $0x8] sm:$0xff]
          %v356 = vmul.f32 %v354, 0.020833334
          %v357 = vmul.f32 %v355, 0.020833334
          %v358 = vsub.f32 %v348, %v356
          %v359 = vsub.f32 %v349, %v357
          %v360 = vmul.f32 %v352, 0.9
          %v361 = vmul.f32 %v353, 0.9
          %v362 = vmul.f32 %v358, 0.1
          %v363 = vmul.f32 %v359, 0.1
          %v364 = vadd.f32 %v360, %v362
          %v365 = vadd.f32 %v361, %v363
          %366 = vst.msk [vmem:[%s193] sm:$0xff] %vm298, %v364
          %367 = vst.msk [vmem:[%s193 + $0x8] sm:$0xff] %vm298, %v365
        $region36: #{tpu_custom_call.1} parent=27 // pred_fallthru
          _
        %s368 = sand.u32 %s87, 1
        %s369 = sand.u32 %s87, 1
        %s370 = smul.addr %s369, 16
        %s371 = scalar_lea.vmem [#allocation6], %s370
        // Predicated region
        $region37: #{tpu_custom_call.1} parent=27 // pred_check
          %p372 = pneg %p97
        $region38: #{tpu_custom_call.1} parent=27 // pred_check_branch
          %374 = sbr.rel (%p372) target = $region40
        $region39: #{tpu_custom_call.1} parent=27 // pred_region
          %s375 = smul.u32 2, %s17
          %s376 = ssub.s32 3, %s375
          %p377 = scmp.lt.s32.totalorder %s376, 2
          %s378 = scalar_select %p377, %s376, 2
          %s379 = smul.u32 128, %s378
          %p380 = scmp.ne.s32.totalorder 0, %s379
          %s381 = smul.addr %s375, 8
          %s382 = scalar_lea.vmem %s2, %s381
          // Predicated region
          $region41: #{tpu_custom_call.1} parent=39 // pred_check
            %p383 = pneg %p380
          $region42: #{tpu_custom_call.1} parent=39 // pred_check_branch
            %385 = sbr.rel (%p383) target = $region44
          $region43: #{tpu_custom_call.1} parent=39 // pred_region
            // Predicated region
            $region45: #{tpu_custom_call.1} parent=43 // pred_check
              _
            $region46: #{tpu_custom_call.1} parent=43 // pred_check_branch
              %387 = sbr.rel (0) target = $region48
            $region47: #{tpu_custom_call.1} parent=43 // pred_region
              // Predicated region
              $region67: #{tpu_custom_call.1} parent=47 // pred_check
                _
              $region68: #{tpu_custom_call.1} parent=47 // pred_check_branch
                %439 = sbr.rel (0) target = $region70
              $region69: #{tpu_custom_call.1} parent=47 // pred_region
                %s440 = sshrl.u32 %s378, 1
                // While loop
                $region71: #{tpu_custom_call.1} parent=69 // loop_pre_header
                  _
                $region72: #{tpu_custom_call.1} parent=69 // loop_header
                  %s442 = sphi 0, %s444
                  %p443 = scmp.ge.s32.totalorder %s442, %s440
                  %s447 = sphi 0, %s456
                  %s448 = sphi %s371, %s459
                  %s449 = sphi %s382, %s460
                $region73: #{tpu_custom_call.1} parent=69 // loop_header_branch
                  %446 = sbr.rel (%p443) target = $region77
                $region74: #{tpu_custom_call.1} parent=69 // loop_body
                  %v450 = vld [vmem:[%s448] sm:$0xff]
                  %451 = vst [vmem:[%s449] sm:$0xff] %v450
                  %v452 = vld [vmem:[%s448 + $0x8] sm:$0xff]
                  %453 = vst [vmem:[%s449 + $0x8] sm:$0xff] %v452
                  %s454 = sadd.s32 1, %s447
                  %p455 = scmp.ge.s32.totalorder %s454, %s440
                  %s456 = scalar_select %p455, 0, %s454
                  %s457 = smul.u32 %s456, 16
                  %s458 = smul.u32 %s456, 16
                  %s459 = scalar_lea.vmem %s371, %s457 [#allocation6]
                  %s460 = scalar_lea.vmem %s382, %s458
                $region75: #{tpu_custom_call.1} parent=69 // loop_footer
                  %s444 = sadd.s32 %s442, 1
                $region76: #{tpu_custom_call.1} parent=69 // loop_footer_branch
                  %441 = sbr.rel target = $region72
                $region77: #{tpu_custom_call.1} parent=69 // loop_exit
                  _
                %s461 = sshrl.u32 %s378, 1
                %s462 = sand.u32 %s378, 1
                %s463 = smul.u32 %s461, 2
                %s464 = smul.u32 8, %s463
                %s465 = scalar_lea.vmem %s371, %s464 [#allocation6]
                %s466 = smul.u32 8, %s463
                %s467 = scalar_lea.vmem %s382, %s466
                // While loop
                $region78: #{tpu_custom_call.1} parent=69 // loop_pre_header
                  _
                $region79: #{tpu_custom_call.1} parent=69 // loop_header
                  %s469 = sphi 0, %s471
                  %p470 = scmp.ge.s32.totalorder %s469, %s462
                  %s474 = sphi 0, %s481
                  %s475 = sphi %s465, %s484
                  %s476 = sphi %s467, %s485
                $region80: #{tpu_custom_call.1} parent=69 // loop_header_branch
                  %473 = sbr.rel (%p470) target = $region84
                $region81: #{tpu_custom_call.1} parent=69 // loop_body
                  %v477 = vld [vmem:[%s475] sm:$0xff]
                  %478 = vst [vmem:[%s476] sm:$0xff] %v477
                  %s479 = sadd.s32 1, %s474
                  %p480 = scmp.ge.s32.totalorder %s479, %s462
                  %s481 = scalar_select %p480, 0, %s479
                  %s482 = smul.u32 %s481, 8
                  %s483 = smul.u32 %s481, 8
                  %s484 = scalar_lea.vmem %s465, %s482 [#allocation6]
                  %s485 = scalar_lea.vmem %s467, %s483
                $region82: #{tpu_custom_call.1} parent=69 // loop_footer
                  %s471 = sadd.s32 %s469, 1
                $region83: #{tpu_custom_call.1} parent=69 // loop_footer_branch
                  %468 = sbr.rel target = $region79
                $region84: #{tpu_custom_call.1} parent=69 // loop_exit
                  _
              $region70: #{tpu_custom_call.1} parent=47 // pred_fallthru
                _
              // Predicated region
              $region85: #{tpu_custom_call.1} parent=47 // pred_check
                _
              $region86: #{tpu_custom_call.1} parent=47 // pred_check_branch
                %487 = sbr.rel target = $region88
              $region87: #{tpu_custom_call.1} parent=47 // pred_region
                _
              $region88: #{tpu_custom_call.1} parent=47 // pred_fallthru
                _
            $region48: #{tpu_custom_call.1} parent=43 // pred_fallthru
              _
            // Predicated region
            $region49: #{tpu_custom_call.1} parent=43 // pred_check
              _
            $region50: #{tpu_custom_call.1} parent=43 // pred_check_branch
              %389 = sbr.rel target = $region52
            $region51: #{tpu_custom_call.1} parent=43 // pred_region
              %s391 = ssub.s32 256, 1
              %s392 = sshrl.u32 %s378, 1
              // While loop
              $region53: #{tpu_custom_call.1} parent=51 // loop_pre_header
                _
              $region54: #{tpu_custom_call.1} parent=51 // loop_header
                %s394 = sphi 0, %s396
                %p395 = scmp.ge.s32.totalorder %s394, %s392
                %s399 = sphi 0, %s408
                %s400 = sphi %s371, %s411
                %s401 = sphi %s382, %s412
              $region55: #{tpu_custom_call.1} parent=51 // loop_header_branch
                %398 = sbr.rel (%p395) target = $region59
              $region56: #{tpu_custom_call.1} parent=51 // loop_body
                %v402 = vld [vmem:[%s400] sm:%s391]
                %403 = vst [vmem:[%s401] sm:%s391] %v402
                %v404 = vld [vmem:[%s400 + $0x8] sm:%s391]
                %405 = vst [vmem:[%s401 + $0x8] sm:%s391] %v404
                %s406 = sadd.s32 1, %s399
                %p407 = scmp.ge.s32.totalorder %s406, %s392
                %s408 = scalar_select %p407, 0, %s406
                %s409 = smul.u32 %s408, 16
                %s410 = smul.u32 %s408, 16
                %s411 = scalar_lea.vmem %s371, %s409 [#allocation6]
                %s412 = scalar_lea.vmem %s382, %s410
              $region57: #{tpu_custom_call.1} parent=51 // loop_footer
                %s396 = sadd.s32 %s394, 1
              $region58: #{tpu_custom_call.1} parent=51 // loop_footer_branch
                %393 = sbr.rel target = $region54
              $region59: #{tpu_custom_call.1} parent=51 // loop_exit
                _
              %s413 = sshrl.u32 %s378, 1
              %s414 = sand.u32 %s378, 1
              %s415 = smul.u32 %s413, 2
              %s416 = smul.u32 8, %s415
              %s417 = scalar_lea.vmem %s371, %s416 [#allocation6]
              %s418 = smul.u32 8, %s415
              %s419 = scalar_lea.vmem %s382, %s418
              // While loop
              $region60: #{tpu_custom_call.1} parent=51 // loop_pre_header
                _
              $region61: #{tpu_custom_call.1} parent=51 // loop_header
                %s421 = sphi 0, %s423
                %p422 = scmp.ge.s32.totalorder %s421, %s414
                %s426 = sphi 0, %s433
                %s427 = sphi %s417, %s436
                %s428 = sphi %s419, %s437
              $region62: #{tpu_custom_call.1} parent=51 // loop_header_branch
                %425 = sbr.rel (%p422) target = $region66
              $region63: #{tpu_custom_call.1} parent=51 // loop_body
                %v429 = vld [vmem:[%s427] sm:%s391]
                %430 = vst [vmem:[%s428] sm:%s391] %v429
                %s431 = sadd.s32 1, %s426
                %p432 = scmp.ge.s32.totalorder %s431, %s414
                %s433 = scalar_select %p432, 0, %s431
                %s434 = smul.u32 %s433, 8
                %s435 = smul.u32 %s433, 8
                %s436 = scalar_lea.vmem %s417, %s434 [#allocation6]
                %s437 = scalar_lea.vmem %s419, %s435
              $region64: #{tpu_custom_call.1} parent=51 // loop_footer
                %s423 = sadd.s32 %s421, 1
              $region65: #{tpu_custom_call.1} parent=51 // loop_footer_branch
                %420 = sbr.rel target = $region61
              $region66: #{tpu_custom_call.1} parent=51 // loop_exit
                _
            $region52: #{tpu_custom_call.1} parent=43 // pred_fallthru
              _
          $region44: #{tpu_custom_call.1} parent=39 // pred_fallthru
            _
          %488 = vnop
        $region40: #{tpu_custom_call.1} parent=27 // pred_fallthru
          _
      $region28: #{tpu_custom_call.1} parent=5 // pred_fallthru
        _
      %p489 = scmp.le.s32.totalorder 2, %s8
      // Predicated region
      $region89: #{tpu_custom_call.1} parent=5 // pred_check
        %p490 = pneg %p489
      $region90: #{tpu_custom_call.1} parent=5 // pred_check_branch
        %492 = sbr.rel (%p490) target = $region92
      $region91: #{tpu_custom_call.1} parent=5 // pred_region
        %s493 = ssub.s32 %s8, 2
        // Predicated region
        $region93: #{tpu_custom_call.1} parent=91 // pred_check
          %p494 = pneg %p103
        $region94: #{tpu_custom_call.1} parent=91 // pred_check_branch
          %496 = sbr.rel (%p494) target = $region96
        $region95: #{tpu_custom_call.1} parent=91 // pred_region
          %s497 = sand.u32 %s88, 1
          %s498 = sand.u32 %s88, 1
          %s499 = smul.addr %s498, 16
          %s500 = scalar_lea.vmem [#allocation6], %s499
        $region96: #{tpu_custom_call.1} parent=91 // pred_fallthru
          _
      $region92: #{tpu_custom_call.1} parent=5 // pred_fallthru
        _
    $region6: #{tpu_custom_call.1} parent=1 // loop_footer
      %s12 = sadd.s32 1, %s8
    $region7: #{tpu_custom_call.1} parent=1 // loop_footer_branch
      %7 = sbr.rel target = $region3
    $region8: #{tpu_custom_call.1} parent=1 // loop_exit
      _

</llo_original>
